<compile_context>
chip_gen: v5e
topology: v5e:2x2
jax: 0.10.0
libtpu: 0.0.40
codegen_flags: <defaults>
</compile_context>

<pallas_src>
import numpy as np

import jax
import jax.numpy as jnp
from jax.experimental import pallas as pl
from jax.experimental.pallas import tpu as pltpu


MAX_BATCH_BLOCK = 1024  # rows per grid step; activations stay ~KB-scale in VMEM


def _round_up(x, m):
    return (x + m - 1) // m * m


# ---------------------------------------------------------------------------
# Fused forward kernel: one chain of matmuls over the block-diag-fused layers.
# ---------------------------------------------------------------------------
def _make_kernel(d_nodes, d_mats, ndof, relu_flags):
    n_layers = len(relu_flags)

    def kernel(xn_ref, xm_ref, w_ref, b_ref, out_ref):
        # Level 0: block-diagonal first layer applied to the raw inputs.
        #   x_cat @ W0 == x_nodes @ W0[:dn] + x_materials @ W0[dn:dn+dm]
        w0 = w_ref[0]
        z = (jnp.dot(xn_ref[...], w0[:d_nodes, :],
                     preferred_element_type=jnp.float32)
             + jnp.dot(xm_ref[...], w0[d_nodes:d_nodes + d_mats, :],
                       preferred_element_type=jnp.float32)
             + b_ref[0])
        if relu_flags[0]:
            z = jnp.maximum(z, 0.0)

        # Remaining levels: a single MXU pass each (BN already folded offline).
        for i in range(1, n_layers):
            z = jnp.dot(z, w_ref[i], preferred_element_type=jnp.float32) + b_ref[i]
            if relu_flags[i]:
                z = jnp.maximum(z, 0.0)

        out_ref[...] = z[:, :ndof].astype(out_ref.dtype)

    return kernel


# ---------------------------------------------------------------------------
# Forward builder: offline block-diag fusion + slab packing + batch-tiled call.
# ---------------------------------------------------------------------------
def make_forward(folded_params):
    """folded_params: {'nodes': [(W[in,out], b[1,out]), ...], 'materials': [...],
    'final': [...]} with BN already folded (see fold_layers).  Returns a jitted
    forward(x_nodes, x_materials) backed by a single batch-tiled pallas_call."""
    nodes = folded_params["nodes"]
    mats = folded_params["materials"]
    final = folded_params["final"]

    # TODO(synk): support branches of unequal depth (would need a fallback to
    # separate per-branch chains instead of level-wise block-diag fusion).
    assert len(nodes) == len(mats), "block-diag fusion needs equal branch depth"

    d_nodes = int(nodes[0][0].shape[0])
    d_mats = int(mats[0][0].shape[0])
    ndof = int(final[-1][0].shape[1])

    # Level-wise block-diagonal fusion of the two branches.
    combined = []
    for (wn, bn), (wm, bm) in zip(nodes, mats):
        in_n, out_n = wn.shape
        in_m, out_m = wm.shape
        w = np.zeros((in_n + in_m, out_n + out_m), np.float32)
        w[:in_n, :out_n] = np.asarray(wn, np.float32)
        w[in_n:, out_n:] = np.asarray(wm, np.float32)
        b = np.concatenate([np.asarray(bn, np.float32),
                            np.asarray(bm, np.float32)], axis=1)
        combined.append((w, b))

    layers = combined + [(np.asarray(w, np.float32), np.asarray(b, np.float32))
                         for (w, b) in final]
    # ReLU on every level except the branch-output level and the final output.
    relu_flags = ([True] * (len(nodes) - 1) + [False]
                  + [True] * (len(final) - 1) + [False])

    n_layers = len(layers)
    pad_dim = _round_up(max(max(w.shape) for w, _ in layers), 8)

    w_slab = np.zeros((n_layers, pad_dim, pad_dim), np.float32)
    b_slab = np.zeros((n_layers, 1, pad_dim), np.float32)
    for i, (w, b) in enumerate(layers):
        w_slab[i, : w.shape[0], : w.shape[1]] = w
        b_slab[i, 0, : b.shape[1]] = b[0]
    w_slab = jnp.asarray(w_slab)
    b_slab = jnp.asarray(b_slab)

    kernel = _make_kernel(d_nodes, d_mats, ndof, tuple(relu_flags))

    @jax.jit
    def forward(x_nodes, x_materials):
        # Match PyTorch's unsqueeze(0) on 1-D inputs.
        if x_nodes.ndim == 1:
            x_nodes = x_nodes[None, :]
        if x_materials.ndim == 1:
            x_materials = x_materials[None, :]
        x_nodes = x_nodes.astype(jnp.float32)
        x_materials = x_materials.astype(jnp.float32)

        batch = x_nodes.shape[0]
        n_blocks = -(-batch // MAX_BATCH_BLOCK)
        tb = _round_up(-(-batch // n_blocks), 8)          # rows per grid step
        batch_pad = tb * n_blocks
        if batch_pad != batch:
            extra = batch_pad - batch
            x_nodes = jnp.pad(x_nodes, ((0, extra), (0, 0)))
            x_materials = jnp.pad(x_materials, ((0, extra), (0, 0)))

        out = pl.pallas_call(
            kernel,
            out_shape=jax.ShapeDtypeStruct((batch_pad, ndof), jnp.float32),
            grid=(n_blocks,),
            in_specs=[
                pl.BlockSpec((tb, d_nodes), lambda i: (i, 0)),
                pl.BlockSpec((tb, d_mats), lambda i: (i, 0)),
                # Whole-slab blocks with a constant index_map: VMEM-resident
                # across all grid steps (no re-DMA).
                pl.BlockSpec((n_layers, pad_dim, pad_dim), lambda i: (0, 0, 0)),
                pl.BlockSpec((n_layers, 1, pad_dim), lambda i: (0, 0, 0)),
            ],
            out_specs=pl.BlockSpec((tb, ndof), lambda i: (i, 0)),
            compiler_params=pltpu.CompilerParams(
                dimension_semantics=("parallel",),
                vmem_limit_bytes=32 * 1024 * 1024,
            ),
        )(x_nodes, x_materials, w_slab, b_slab)

        return out[:batch] if batch_pad != batch else out

    return forward


# ---------------------------------------------------------------------------
# Parameter construction (mirrors nn.Linear / eval-mode nn.BatchNorm1d).
# ---------------------------------------------------------------------------
def init_linear(key, in_dim, out_dim):
    k_w, k_b = jax.random.split(key)
    bound = 1.0 / (in_dim ** 0.5)
    # PyTorch stores weight as [out, in]; we keep the transposed [in, out] copy.
    w = jax.random.uniform(k_w, (out_dim, in_dim), jnp.float32, -bound, bound)
    b = jax.random.uniform(k_b, (out_dim,), jnp.float32, -bound, bound)
    return w.T, b


def init_bn(key, out_dim, eps=1e-5):
    # Non-trivial eval-mode BN params (incl. negative gammas) so the offline
    # fold is genuinely exercised against the unfolded reference.
    k1, k2, k3, k4, k5 = jax.random.split(key, 5)
    gamma = jax.random.uniform(k1, (out_dim,), jnp.float32, 0.5, 1.5)
    gamma = gamma * jnp.where(jax.random.bernoulli(k5, 0.25, (out_dim,)), -1.0, 1.0)
    beta = 0.1 * jax.random.normal(k2, (out_dim,), jnp.float32)
    running_mean = 0.1 * jax.random.normal(k3, (out_dim,), jnp.float32)
    running_var = jax.random.uniform(k4, (out_dim,), jnp.float32, 0.5, 1.5)
    scale = gamma / jnp.sqrt(running_var + eps)
    shift = beta - running_mean * scale
    return scale, shift


def make_branch_raw(key, dim_in, hidden_dims, dim_out, eps=1e-5):
    """Raw (unfolded) per-layer params: (W[in,out], b[out], bn_scale, bn_shift, relu).
    Layers 0..n-2: Linear -> ReLU -> BN.  Layer n-1 (out): Linear -> BN."""
    sizes = [dim_in] + list(hidden_dims) + [dim_out]
    n = len(sizes) - 1
    keys = jax.random.split(key, 2 * n)
    layers = []
    for i in range(n):
        w_t, b = init_linear(keys[2 * i], sizes[i], sizes[i + 1])
        scale, shift = init_bn(keys[2 * i + 1], sizes[i + 1], eps)
        layers.append((w_t, b, scale, shift, i < n - 1))
    return layers


def fold_layers(raw_layers):
    """Fold eval-mode BN into the Linear parameters (sign-safe for any gamma):
       - BN after a ReLU layer is deferred into the NEXT layer (left fold),
       - BN after the final (no-ReLU) layer is folded into that layer (right fold).
    Returns [(W[in,out], b[1,out]), ...]."""
    folded = []
    pend_s = None  # pending (scale, shift) from the previous ReLU layer's BN
    pend_t = None
    for (w_t, b, scale, shift, apply_relu) in raw_layers:
        if pend_s is not None:
            w = pend_s[:, None] * w_t
            bb = b + pend_t @ w_t
        else:
            w = w_t
            bb = b
        if apply_relu:
            folded.append((w, bb.reshape(1, -1)))
            pend_s, pend_t = scale, shift
        else:
            w = w * scale[None, :]
            bb = bb * scale + shift
            folded.append((w, bb.reshape(1, -1)))
            pend_s, pend_t = None, None
    assert pend_s is None, "branch must end with a non-ReLU output layer"
    return folded


# ---------------------------------------------------------------------------
# Pure-JAX reference on the UNFOLDED parameters (checks both the fused kernel
# and the BN fold / block-diag packing).
# ---------------------------------------------------------------------------
def ref_branch(x, raw_layers):
    z = x
    for (w_t, b, scale, shift, apply_relu) in raw_layers:
        y = z @ w_t + b
        if apply_relu:
            y = jnp.maximum(y, 0.0)
        z = y * scale + shift
    return z


def ref_forward(raw_params, x_nodes, x_materials):
    zn = ref_branch(x_nodes, raw_params["nodes"])
    zm = ref_branch(x_materials, raw_params["materials"])
    zc = jnp.concatenate([zn, zm], axis=1)
    return ref_branch(zc, raw_params["final"])


# ---------------------------------------------------------------------------
if __name__ == "__main__":
    # Module hyper-parameters (consistent with the PyTorch __init__).
    input_dim_nodes = 16
    input_dim_materials = 8
    nodes_layers = [32, 32]
    material_layers = [32, 16]
    final_layers = [64, 32]
    ndof = 8

    root = jax.random.PRNGKey(0)
    k_nodes, k_mat, k_final, k_data = jax.random.split(root, 4)

    raw_params = {
        "nodes": make_branch_raw(k_nodes, input_dim_nodes, nodes_layers, ndof),
        "materials": make_branch_raw(k_mat, input_dim_materials, material_layers, ndof),
        "final": make_branch_raw(k_final, ndof * 2, final_layers, ndof),
    }
    folded_params = {k: fold_layers(v) for k, v in raw_params.items()}

    forward = make_forward(folded_params)

    # Exercise both the single-block (padded) path and the multi-block grid.
    for batch in (12, 2500):
        kk = jax.random.fold_in(k_data, batch)
        k_xn, k_xm = jax.random.split(kk)
        x_nodes = jax.random.normal(k_xn, (batch, input_dim_nodes), jnp.float32)
        x_materials = jax.random.normal(k_xm, (batch, input_dim_materials), jnp.float32)

        out = jax.block_until_ready(forward(x_nodes, x_materials))
        ref = jax.block_until_ready(ref_forward(raw_params, x_nodes, x_materials))

        assert out.shape == (batch, ndof)
        assert jnp.allclose(out, ref, atol=1e-3, rtol=1e-3), \
            f"mismatch vs reference at batch={batch}"

    print("KERNEL_OK")
</pallas_src>

<mosaic_0001>
module attributes {stable_mosaic.version = 11 : i64} {
  func.func @kernel(%arg0: i32, %arg1: memref<16x16xf32, #tpu.memory_space<vmem>>, %arg2: memref<16x8xf32, #tpu.memory_space<vmem>>, %arg3: memref<6x64x64xf32, #tpu.memory_space<vmem>>, %arg4: memref<6x1x64xf32, #tpu.memory_space<vmem>>, %arg5: memref<16x8xf32, #tpu.memory_space<vmem>>) attributes {dimension_semantics = [#tpu.dimension_semantics<parallel>], iteration_bounds = array<i64: 1>, scalar_prefetch = 0 : i64, scratch_operands = 0 : i64, tpu.core_type = #tpu.core_type<tc>, window_params = [{transform_indices = @transform_0, window_bounds = array<i64: 16, 16>}, {transform_indices = @transform_1, window_bounds = array<i64: 16, 8>}, {pipeline_mode = #tpu.pipeline_mode<synchronous>, transform_indices = @transform_2, window_bounds = array<i64: 6, 64, 64>}, {pipeline_mode = #tpu.pipeline_mode<synchronous>, transform_indices = @transform_3, window_bounds = array<i64: 6, 1, 64>}, {transform_indices = @transform_4, window_bounds = array<i64: 16, 8>}]} {
    %c0 = arith.constant 0 : index
    %c0_0 = arith.constant 0 : index
    %c0_1 = arith.constant 0 : index
    %0 = vector.load %arg3[%c0, %c0_0, %c0_1] : memref<6x64x64xf32, #tpu.memory_space<vmem>>, vector<1x64x64xf32>
    %1 = vector.shape_cast %0 : vector<1x64x64xf32> to vector<64x64xf32>
    %c0_2 = arith.constant 0 : index
    %c0_3 = arith.constant 0 : index
    %2 = vector.load %arg1[%c0_2, %c0_3] : memref<16x16xf32, #tpu.memory_space<vmem>>, vector<16x16xf32>
    %3 = vector.extract_strided_slice %1 {offsets = [0, 0], sizes = [16, 64], strides = [1, 1]} : vector<64x64xf32> to vector<16x64xf32>
    %cst = arith.constant dense<0.000000e+00> : vector<16x64xf32>
    %4 = tpu.matmul %2, %3, %cst {dimension_numbers = #tpu.dot_dimension_numbers<[1], [0], [0], [1], [0, 0, 1, 1], [], []>} : vector<16x16xf32>, vector<16x64xf32>, vector<16x64xf32> -> vector<16x64xf32>
    %c0_4 = arith.constant 0 : index
    %c0_5 = arith.constant 0 : index
    %5 = vector.load %arg2[%c0_4, %c0_5] : memref<16x8xf32, #tpu.memory_space<vmem>>, vector<16x8xf32>
    %6 = vector.extract_strided_slice %1 {offsets = [16, 0], sizes = [8, 64], strides = [1, 1]} : vector<64x64xf32> to vector<8x64xf32>
    %cst_6 = arith.constant dense<0.000000e+00> : vector<16x64xf32>
    %7 = tpu.matmul %5, %6, %cst_6 {dimension_numbers = #tpu.dot_dimension_numbers<[1], [0], [0], [1], [0, 0, 1, 1], [], []>} : vector<16x8xf32>, vector<8x64xf32>, vector<16x64xf32> -> vector<16x64xf32>
    %8 = arith.addf %4, %7 : vector<16x64xf32>
    %c0_7 = arith.constant 0 : index
    %c0_8 = arith.constant 0 : index
    %c0_9 = arith.constant 0 : index
    %9 = vector.load %arg4[%c0_7, %c0_8, %c0_9] : memref<6x1x64xf32, #tpu.memory_space<vmem>>, vector<1x1x64xf32>
    %10 = vector.shape_cast %9 : vector<1x1x64xf32> to vector<1x64xf32>
    %11 = vector.broadcast %10 : vector<1x64xf32> to vector<16x64xf32>
    %12 = arith.addf %8, %11 : vector<16x64xf32>
    %cst_10 = arith.constant 0.000000e+00 : f32
    %13 = vector.broadcast %cst_10 : f32 to vector<16x64xf32>
    %14 = arith.maximumf %12, %13 : vector<16x64xf32>
    %c1 = arith.constant 1 : index
    %c0_11 = arith.constant 0 : index
    %c0_12 = arith.constant 0 : index
    %15 = vector.load %arg3[%c1, %c0_11, %c0_12] : memref<6x64x64xf32, #tpu.memory_space<vmem>>, vector<1x64x64xf32>
    %16 = vector.shape_cast %15 : vector<1x64x64xf32> to vector<64x64xf32>
    %cst_13 = arith.constant dense<0.000000e+00> : vector<16x64xf32>
    %17 = tpu.matmul %14, %16, %cst_13 {dimension_numbers = #tpu.dot_dimension_numbers<[1], [0], [0], [1], [0, 0, 1, 1], [], []>} : vector<16x64xf32>, vector<64x64xf32>, vector<16x64xf32> -> vector<16x64xf32>
    %c1_14 = arith.constant 1 : index
    %c0_15 = arith.constant 0 : index
    %c0_16 = arith.constant 0 : index
    %18 = vector.load %arg4[%c1_14, %c0_15, %c0_16] : memref<6x1x64xf32, #tpu.memory_space<vmem>>, vector<1x1x64xf32>
    %19 = vector.shape_cast %18 : vector<1x1x64xf32> to vector<1x64xf32>
    %20 = vector.broadcast %19 : vector<1x64xf32> to vector<16x64xf32>
    %21 = arith.addf %17, %20 : vector<16x64xf32>
    %cst_17 = arith.constant 0.000000e+00 : f32
    %22 = vector.broadcast %cst_17 : f32 to vector<16x64xf32>
    %23 = arith.maximumf %21, %22 : vector<16x64xf32>
    %c2 = arith.constant 2 : index
    %c0_18 = arith.constant 0 : index
    %c0_19 = arith.constant 0 : index
    %24 = vector.load %arg3[%c2, %c0_18, %c0_19] : memref<6x64x64xf32, #tpu.memory_space<vmem>>, vector<1x64x64xf32>
    %25 = vector.shape_cast %24 : vector<1x64x64xf32> to vector<64x64xf32>
    %cst_20 = arith.constant dense<0.000000e+00> : vector<16x64xf32>
    %26 = tpu.matmul %23, %25, %cst_20 {dimension_numbers = #tpu.dot_dimension_numbers<[1], [0], [0], [1], [0, 0, 1, 1], [], []>} : vector<16x64xf32>, vector<64x64xf32>, vector<16x64xf32> -> vector<16x64xf32>
    %c2_21 = arith.constant 2 : index
    %c0_22 = arith.constant 0 : index
    %c0_23 = arith.constant 0 : index
    %27 = vector.load %arg4[%c2_21, %c0_22, %c0_23] : memref<6x1x64xf32, #tpu.memory_space<vmem>>, vector<1x1x64xf32>
    %28 = vector.shape_cast %27 : vector<1x1x64xf32> to vector<1x64xf32>
    %29 = vector.broadcast %28 : vector<1x64xf32> to vector<16x64xf32>
    %30 = arith.addf %26, %29 : vector<16x64xf32>
    %c3 = arith.constant 3 : index
    %c0_24 = arith.constant 0 : index
    %c0_25 = arith.constant 0 : index
    %31 = vector.load %arg3[%c3, %c0_24, %c0_25] : memref<6x64x64xf32, #tpu.memory_space<vmem>>, vector<1x64x64xf32>
    %32 = vector.shape_cast %31 : vector<1x64x64xf32> to vector<64x64xf32>
    %cst_26 = arith.constant dense<0.000000e+00> : vector<16x64xf32>
    %33 = tpu.matmul %30, %32, %cst_26 {dimension_numbers = #tpu.dot_dimension_numbers<[1], [0], [0], [1], [0, 0, 1, 1], [], []>} : vector<16x64xf32>, vector<64x64xf32>, vector<16x64xf32> -> vector<16x64xf32>
    %c3_27 = arith.constant 3 : index
    %c0_28 = arith.constant 0 : index
    %c0_29 = arith.constant 0 : index
    %34 = vector.load %arg4[%c3_27, %c0_28, %c0_29] : memref<6x1x64xf32, #tpu.memory_space<vmem>>, vector<1x1x64xf32>
    %35 = vector.shape_cast %34 : vector<1x1x64xf32> to vector<1x64xf32>
    %36 = vector.broadcast %35 : vector<1x64xf32> to vector<16x64xf32>
    %37 = arith.addf %33, %36 : vector<16x64xf32>
    %cst_30 = arith.constant 0.000000e+00 : f32
    %38 = vector.broadcast %cst_30 : f32 to vector<16x64xf32>
    %39 = arith.maximumf %37, %38 : vector<16x64xf32>
    %c4 = arith.constant 4 : index
    %c0_31 = arith.constant 0 : index
    %c0_32 = arith.constant 0 : index
    %40 = vector.load %arg3[%c4, %c0_31, %c0_32] : memref<6x64x64xf32, #tpu.memory_space<vmem>>, vector<1x64x64xf32>
    %41 = vector.shape_cast %40 : vector<1x64x64xf32> to vector<64x64xf32>
    %cst_33 = arith.constant dense<0.000000e+00> : vector<16x64xf32>
    %42 = tpu.matmul %39, %41, %cst_33 {dimension_numbers = #tpu.dot_dimension_numbers<[1], [0], [0], [1], [0, 0, 1, 1], [], []>} : vector<16x64xf32>, vector<64x64xf32>, vector<16x64xf32> -> vector<16x64xf32>
    %c4_34 = arith.constant 4 : index
    %c0_35 = arith.constant 0 : index
    %c0_36 = arith.constant 0 : index
    %43 = vector.load %arg4[%c4_34, %c0_35, %c0_36] : memref<6x1x64xf32, #tpu.memory_space<vmem>>, vector<1x1x64xf32>
    %44 = vector.shape_cast %43 : vector<1x1x64xf32> to vector<1x64xf32>
    %45 = vector.broadcast %44 : vector<1x64xf32> to vector<16x64xf32>
    %46 = arith.addf %42, %45 : vector<16x64xf32>
    %cst_37 = arith.constant 0.000000e+00 : f32
    %47 = vector.broadcast %cst_37 : f32 to vector<16x64xf32>
    %48 = arith.maximumf %46, %47 : vector<16x64xf32>
    %c5 = arith.constant 5 : index
    %c0_38 = arith.constant 0 : index
    %c0_39 = arith.constant 0 : index
    %49 = vector.load %arg3[%c5, %c0_38, %c0_39] : memref<6x64x64xf32, #tpu.memory_space<vmem>>, vector<1x64x64xf32>
    %50 = vector.shape_cast %49 : vector<1x64x64xf32> to vector<64x64xf32>
    %cst_40 = arith.constant dense<0.000000e+00> : vector<16x64xf32>
    %51 = tpu.matmul %48, %50, %cst_40 {dimension_numbers = #tpu.dot_dimension_numbers<[1], [0], [0], [1], [0, 0, 1, 1], [], []>} : vector<16x64xf32>, vector<64x64xf32>, vector<16x64xf32> -> vector<16x64xf32>
    %c5_41 = arith.constant 5 : index
    %c0_42 = arith.constant 0 : index
    %c0_43 = arith.constant 0 : index
    %52 = vector.load %arg4[%c5_41, %c0_42, %c0_43] : memref<6x1x64xf32, #tpu.memory_space<vmem>>, vector<1x1x64xf32>
    %53 = vector.shape_cast %52 : vector<1x1x64xf32> to vector<1x64xf32>
    %54 = vector.broadcast %53 : vector<1x64xf32> to vector<16x64xf32>
    %55 = arith.addf %51, %54 : vector<16x64xf32>
    %56 = vector.extract_strided_slice %55 {offsets = [0, 0], sizes = [16, 8], strides = [1, 1]} : vector<16x64xf32> to vector<16x8xf32>
    %c0_44 = arith.constant 0 : index
    %c0_45 = arith.constant 0 : index
    %57 = vector.load %arg5[%c0_44, %c0_45] : memref<16x8xf32, #tpu.memory_space<vmem>>, vector<16x8xf32>
    tpu.vector_store %arg5[%c0_44, %c0_45], %56 {strides = array<i32>} : memref<16x8xf32, #tpu.memory_space<vmem>>, vector<16x8xf32>,
    return
  }
  func.func @transform_0(%arg0: i32) -> (i32, i32) {
    %c0_i32 = arith.constant 0 : i32
    %c0_i32_0 = arith.constant 0 : i32
    return %arg0, %c0_i32 : i32, i32
  }
  func.func @transform_1(%arg0: i32) -> (i32, i32) {
    %c0_i32 = arith.constant 0 : i32
    %c0_i32_0 = arith.constant 0 : i32
    return %arg0, %c0_i32 : i32, i32
  }
  func.func @transform_2(%arg0: i32) -> (i32, i32, i32) {
    %c0_i32 = arith.constant 0 : i32
    %c0_i32_0 = arith.constant 0 : i32
    %c0_i32_1 = arith.constant 0 : i32
    %c0_i32_2 = arith.constant 0 : i32
    return %c0_i32, %c0_i32_0, %c0_i32_1 : i32, i32, i32
  }
  func.func @transform_3(%arg0: i32) -> (i32, i32, i32) {
    %c0_i32 = arith.constant 0 : i32
    %c0_i32_0 = arith.constant 0 : i32
    %c0_i32_1 = arith.constant 0 : i32
    %c0_i32_2 = arith.constant 0 : i32
    return %c0_i32, %c0_i32_0, %c0_i32_1 : i32, i32, i32
  }
  func.func @transform_4(%arg0: i32) -> (i32, i32) {
    %c0_i32 = arith.constant 0 : i32
    %c0_i32_0 = arith.constant 0 : i32
    return %arg0, %c0_i32 : i32, i32
  }
}

</mosaic_0001>

<llo_original>
// kernel: forward.1
$region0: #{forward.1}
  #allocation0 [shape = 'u32[]', space=smem, size = 0x4, offset = 0x4, fixed_abs, tag = 'smem constant byte address 0x4 - core index']
  #allocation1 [shape = 'u32[72,128]{1,0:T(1,128)}', space=vmem, size = 0x9000, scoped, tag = 'internal scratch']
  %s0 = inlined_call_operand.vmem [shape: f32[16,16], index: 0, kind: input, shape index: {}]
  %s1 = inlined_call_operand.vmem [shape: f32[16,8], index: 1, kind: input, shape index: {}]
  %s2 = inlined_call_operand.hbm [shape: f32[6,64,64], index: 2, kind: input, shape index: {}]
  %s3 = inlined_call_operand.vmem [shape: f32[6,1,64], index: 3, kind: input, shape index: {}]
  %s4 = inlined_call_operand.vmem [shape: f32[16,8], index: 4, kind: output, shape index: {}]
  %s5 = sld [smem:[#allocation0]]
  $region30: #{forward.1} parent=0
    _
  %s7 = ssub.s32 1, %s5
  %s8 = scalar_select 0, %s7, %s5
  $region1: #{forward.1} parent=0
    #allocation2 [shape = 'u8[196608]{0}', space=vmem, size = 0x30000, scoped, tag = 'input window, operand 2, single buffered']
    #allocation3 [shape = 's32[1]{0}', space=sflag, size = 0x4, scoped, tag = 'scoped memory for forward.1']
    %9 = vsyncpa [#allocation3], 0
    // Predicated region
    $region2: #{forward.1} parent=1 // pred_check
      _
    $region3: #{forward.1} parent=1 // pred_check_branch
      %11 = sbr.rel (0) target = $region5
    $region4: #{forward.1} parent=1 // pred_region
      _
    $region5: #{forward.1} parent=1 // pred_fallthru
      _
    // Predicated region
    $region6: #{forward.1} parent=1 // pred_check
      _
    $region7: #{forward.1} parent=1 // pred_check_branch
      %13 = sbr.rel (0) target = $region9
    $region8: #{forward.1} parent=1 // pred_region
      _
    $region9: #{forward.1} parent=1 // pred_fallthru
      _
    // Predicated region
    $region10: #{forward.1} parent=1 // pred_check
      _
    $region11: #{forward.1} parent=1 // pred_check_branch
      %15 = sbr.rel (0) target = $region13
    $region12: #{forward.1} parent=1 // pred_region
      %17 = vsyncadd [#allocation3], 0
      %s18 = sshll.u32 %s2, 4
      %s19 = int_to_ptr.hbm [resolvable:$true] %s18
      %s20 = sshll.u32 [#allocation2], 4
      %s21 = int_to_ptr.vmem [resolvable:$true] %s20
      %26 = dma.hbm_to_vmem [thread:$0]  %s19, 6144, %s21, [#allocation3], 128, 128, 8
    $region13: #{forward.1} parent=1 // pred_fallthru
      _
    // Predicated region
    $region14: #{forward.1} parent=1 // pred_check
      _
    $region15: #{forward.1} parent=1 // pred_check_branch
      %28 = sbr.rel (0) target = $region17
    $region16: #{forward.1} parent=1 // pred_region
      _
    $region17: #{forward.1} parent=1 // pred_fallthru
      _
    // Predicated region
    $region18: #{forward.1} parent=1 // pred_check
      _
    $region19: #{forward.1} parent=1 // pred_check_branch
      %30 = sbr.rel (0) target = $region21
    $region20: #{forward.1} parent=1 // pred_region
      %32 = dma.done [#allocation3], 6144
    $region21: #{forward.1} parent=1 // pred_fallthru
      _
    %v33 = vld [vmem:[#allocation2] sm:$0xff]
    %v34 = vld [vmem:[#allocation2 + $0x8] sm:$0xff]
    %v35 = vld [vmem:[#allocation2 + $0x10] sm:$0xff]
    %v36 = vld [vmem:[%s0] sm:$0xff]
    %v37 = vld [vmem:[%s0 + $0x8] sm:$0xff]
    %v38 = vld [vmem:[%s1] sm:$0xff]
    %v39 = vld [vmem:[%s1 + $0x8] sm:$0xff]
    %vm40 = vcmask 64512
    %v42 = vsel %vm40, %v38, 0
    %v45 = vsel %vm40, %v39, 0
    %47 = vmatpush.msra.mxu0 0.0
    %48 = vmatpush.msra.mxu0 0.0
    %49 = vmatpush.msra.mxu0 0.0
    %50 = vmatpush.msra.mxu0 0.0
    %51 = vmatpush.msra.mxu0 0.0
    %52 = vmatpush.msra.mxu0 0.0
    %53 = vmatpush.msra.mxu0 0.0
    %54 = vmatpush.msra.mxu0 0.0
    %55 = vmatpush.msra.mxu0 0.0
    %56 = vmatpush.msra.mxu0 0.0
    %57 = vmatpush.msra.mxu0 0.0
    %58 = vmatpush.msra.mxu0 0.0
    %59 = vmatpush.msra.mxu0 0.0
    %60 = vmatpush.msra.mxu0 0.0
    %61 = vmatpush.msra.mxu0 0.0
    %62 = vmatpush.msra.mxu0 %v35
    %63 = vmatmul.f32.gmra.mxu0 %v42
    %v64 = vpop.f32.mrf.mxu0
    %v65 = vadd.f32 0.0, %v64
    %66 = vmatmul.f32.gmra.mxu0 %v45
    %v67 = vpop.f32.mrf.mxu0
    %v68 = vadd.f32 0.0, %v67
    %69 = vdwg.mxu0
    %vm70 = vcmask 130048
    %v72 = vsel %vm70, %v36, 0
    %v75 = vsel %vm70, %v37, 0
    %77 = vmatpush.msra.mxu0 0.0
    %78 = vmatpush.msra.mxu0 0.0
    %79 = vmatpush.msra.mxu0 0.0
    %80 = vmatpush.msra.mxu0 0.0
    %81 = vmatpush.msra.mxu0 0.0
    %82 = vmatpush.msra.mxu0 0.0
    %83 = vmatpush.msra.mxu0 0.0
    %84 = vmatpush.msra.mxu0 0.0
    %85 = vmatpush.msra.mxu0 0.0
    %86 = vmatpush.msra.mxu0 0.0
    %87 = vmatpush.msra.mxu0 0.0
    %88 = vmatpush.msra.mxu0 0.0
    %89 = vmatpush.msra.mxu0 0.0
    %90 = vmatpush.msra.mxu0 0.0
    %91 = vmatpush.msra.mxu0 %v34
    %92 = vmatpush.msra.mxu0 %v33
    %93 = vmatmul.f32.gmra.mxu0 %v72
    %v94 = vpop.f32.mrf.mxu0
    %v95 = vadd.f32 %v65, %v94
    %96 = vmatmul.f32.gmra.mxu0 %v75
    %v97 = vpop.f32.mrf.mxu0
    %v98 = vadd.f32 %v68, %v97
    %99 = vdwg.mxu0
    %v100 = vld [vmem:[%s3] sm:$0x1]
    %v102 = vperm.slane %v100, 0
    %v104 = vadd.f32 %v95, %v102
    %v105 = vadd.f32 %v98, %v102
    %v106 = vmax.f32 %v104, 0.0
    %v107 = vmax.f32 %v105, 0.0
    %s108 = scalar_lea.vmem [#allocation2], 64
    %v109 = vld [vmem:[%s108] sm:$0xff]
    %v110 = vld [vmem:[%s108 + $0x8] sm:$0xff]
    %v111 = vld [vmem:[%s108 + $0x10] sm:$0xff]
    %v112 = vld [vmem:[%s108 + $0x18] sm:$0xff]
    %v113 = vld [vmem:[%s108 + $0x20] sm:$0xff]
    %v114 = vld [vmem:[%s108 + $0x28] sm:$0xff]
    %v115 = vld [vmem:[%s108 + $0x30] sm:$0xff]
    %v116 = vld [vmem:[%s108 + $0x38] sm:$0xff]
    %s117 = scalar_lea.vmem %s3, 1
    %v118 = vld [vmem:[%s117] sm:$0x1]
    %v120 = vperm.slane %v118, 0
    %vm122 = vcmask 523264
    %v124 = vsel %vm122, %v106, 0
    %v127 = vsel %vm122, %v107, 0
    %129 = vmatpush.msra.mxu0 0.0
    %130 = vmatpush.msra.mxu0 0.0
    %131 = vmatpush.msra.mxu0 0.0
    %132 = vmatpush.msra.mxu0 0.0
    %133 = vmatpush.msra.mxu0 0.0
    %134 = vmatpush.msra.mxu0 0.0
    %135 = vmatpush.msra.mxu0 0.0
    %136 = vmatpush.msra.mxu0 0.0
    %137 = vmatpush.msra.mxu0 %v116
    %138 = vmatpush.msra.mxu0 %v115
    %139 = vmatpush.msra.mxu0 %v114
    %140 = vmatpush.msra.mxu0 %v113
    %141 = vmatpush.msra.mxu0 %v112
    %142 = vmatpush.msra.mxu0 %v111
    %143 = vmatpush.msra.mxu0 %v110
    %144 = vmatpush.msra.mxu0 %v109
    %145 = vmatmul.f32.gmra.mxu0 %v124
    %v146 = vpop.f32.mrf.mxu0
    %v147 = vadd.f32 %v120, %v146
    %148 = vmatmul.f32.gmra.mxu0 %v127
    %v149 = vpop.f32.mrf.mxu0
    %v150 = vadd.f32 %v120, %v149
    %151 = vdwg.mxu0
    %v152 = vmax.f32 %v147, 0.0
    %v153 = vmax.f32 %v150, 0.0
    %s154 = scalar_lea.vmem [#allocation2], 128
    %v155 = vld [vmem:[%s154] sm:$0xff]
    %v156 = vld [vmem:[%s154 + $0x8] sm:$0xff]
    %v157 = vld [vmem:[%s154 + $0x10] sm:$0xff]
    %v158 = vld [vmem:[%s154 + $0x18] sm:$0xff]
    %v159 = vld [vmem:[%s154 + $0x20] sm:$0xff]
    %v160 = vld [vmem:[%s154 + $0x28] sm:$0xff]
    %v161 = vld [vmem:[%s154 + $0x30] sm:$0xff]
    %v162 = vld [vmem:[%s154 + $0x38] sm:$0xff]
    %s163 = scalar_lea.vmem %s3, 2
    %v164 = vld [vmem:[%s163] sm:$0x1]
    %v166 = vperm.slane %v164, 0
    %v169 = vsel %vm122, %v152, 0
    %v172 = vsel %vm122, %v153, 0
    %174 = vmatpush.msra.mxu0 0.0
    %175 = vmatpush.msra.mxu0 0.0
    %176 = vmatpush.msra.mxu0 0.0
    %177 = vmatpush.msra.mxu0 0.0
    %178 = vmatpush.msra.mxu0 0.0
    %179 = vmatpush.msra.mxu0 0.0
    %180 = vmatpush.msra.mxu0 0.0
    %181 = vmatpush.msra.mxu0 0.0
    %182 = vmatpush.msra.mxu0 %v162
    %183 = vmatpush.msra.mxu0 %v161
    %184 = vmatpush.msra.mxu0 %v160
    %185 = vmatpush.msra.mxu0 %v159
    %186 = vmatpush.msra.mxu0 %v158
    %187 = vmatpush.msra.mxu0 %v157
    %188 = vmatpush.msra.mxu0 %v156
    %189 = vmatpush.msra.mxu0 %v155
    %190 = vmatmul.f32.gmra.mxu0 %v169
    %v191 = vpop.f32.mrf.mxu0
    %v192 = vadd.f32 %v166, %v191
    %193 = vmatmul.f32.gmra.mxu0 %v172
    %v194 = vpop.f32.mrf.mxu0
    %v195 = vadd.f32 %v166, %v194
    %196 = vdwg.mxu0
    %s197 = scalar_lea.vmem [#allocation2], 192
    %v198 = vld [vmem:[%s197] sm:$0xff]
    %v199 = vld [vmem:[%s197 + $0x8] sm:$0xff]
    %v200 = vld [vmem:[%s197 + $0x10] sm:$0xff]
    %v201 = vld [vmem:[%s197 + $0x18] sm:$0xff]
    %v202 = vld [vmem:[%s197 + $0x20] sm:$0xff]
    %v203 = vld [vmem:[%s197 + $0x28] sm:$0xff]
    %v204 = vld [vmem:[%s197 + $0x30] sm:$0xff]
    %v205 = vld [vmem:[%s197 + $0x38] sm:$0xff]
    %s206 = scalar_lea.vmem %s3, 3
    %v207 = vld [vmem:[%s206] sm:$0x1]
    %v209 = vperm.slane %v207, 0
    %v212 = vsel %vm122, %v192, 0
    %v215 = vsel %vm122, %v195, 0
    %217 = vmatpush.msra.mxu0 0.0
    %218 = vmatpush.msra.mxu0 0.0
    %219 = vmatpush.msra.mxu0 0.0
    %220 = vmatpush.msra.mxu0 0.0
    %221 = vmatpush.msra.mxu0 0.0
    %222 = vmatpush.msra.mxu0 0.0
    %223 = vmatpush.msra.mxu0 0.0
    %224 = vmatpush.msra.mxu0 0.0
    %225 = vmatpush.msra.mxu0 %v205
    %226 = vmatpush.msra.mxu0 %v204
    %227 = vmatpush.msra.mxu0 %v203
    %228 = vmatpush.msra.mxu0 %v202
    %229 = vmatpush.msra.mxu0 %v201
    %230 = vmatpush.msra.mxu0 %v200
    %231 = vmatpush.msra.mxu0 %v199
    %232 = vmatpush.msra.mxu0 %v198
    %233 = vmatmul.f32.gmra.mxu0 %v212
    %v234 = vpop.f32.mrf.mxu0
    %v235 = vadd.f32 %v209, %v234
    %236 = vmatmul.f32.gmra.mxu0 %v215
    %v237 = vpop.f32.mrf.mxu0
    %v238 = vadd.f32 %v209, %v237
    %239 = vdwg.mxu0
    %v240 = vmax.f32 %v235, 0.0
    %v241 = vmax.f32 %v238, 0.0
    %s242 = scalar_lea.vmem [#allocation2], 256
    %v243 = vld [vmem:[%s242] sm:$0xff]
    %v244 = vld [vmem:[%s242 + $0x8] sm:$0xff]
    %v245 = vld [vmem:[%s242 + $0x10] sm:$0xff]
    %v246 = vld [vmem:[%s242 + $0x18] sm:$0xff]
    %v247 = vld [vmem:[%s242 + $0x20] sm:$0xff]
    %v248 = vld [vmem:[%s242 + $0x28] sm:$0xff]
    %v249 = vld [vmem:[%s242 + $0x30] sm:$0xff]
    %v250 = vld [vmem:[%s242 + $0x38] sm:$0xff]
    %s251 = scalar_lea.vmem %s3, 4
    %v252 = vld [vmem:[%s251] sm:$0x1]
    %v254 = vperm.slane %v252, 0
    %v257 = vsel %vm122, %v240, 0
    %v260 = vsel %vm122, %v241, 0
    %262 = vmatpush.msra.mxu0 0.0
    %263 = vmatpush.msra.mxu0 0.0
    %264 = vmatpush.msra.mxu0 0.0
    %265 = vmatpush.msra.mxu0 0.0
    %266 = vmatpush.msra.mxu0 0.0
    %267 = vmatpush.msra.mxu0 0.0
    %268 = vmatpush.msra.mxu0 0.0
    %269 = vmatpush.msra.mxu0 0.0
    %270 = vmatpush.msra.mxu0 %v250
    %271 = vmatpush.msra.mxu0 %v249
    %272 = vmatpush.msra.mxu0 %v248
    %273 = vmatpush.msra.mxu0 %v247
    %274 = vmatpush.msra.mxu0 %v246
    %275 = vmatpush.msra.mxu0 %v245
    %276 = vmatpush.msra.mxu0 %v244
    %277 = vmatpush.msra.mxu0 %v243
    %278 = vmatmul.f32.gmra.mxu0 %v257
    %v279 = vpop.f32.mrf.mxu0
    %v280 = vadd.f32 %v254, %v279
    %281 = vmatmul.f32.gmra.mxu0 %v260
    %v282 = vpop.f32.mrf.mxu0
    %v283 = vadd.f32 %v254, %v282
    %284 = vdwg.mxu0
    %v285 = vmax.f32 %v280, 0.0
    %v286 = vmax.f32 %v283, 0.0
    %s287 = scalar_lea.vmem [#allocation2], 320
    %v288 = vld [vmem:[%s287] sm:$0xff]
    %v289 = vld [vmem:[%s287 + $0x8] sm:$0xff]
    %v290 = vld [vmem:[%s287 + $0x10] sm:$0xff]
    %v291 = vld [vmem:[%s287 + $0x18] sm:$0xff]
    %v292 = vld [vmem:[%s287 + $0x20] sm:$0xff]
    %v293 = vld [vmem:[%s287 + $0x28] sm:$0xff]
    %v294 = vld [vmem:[%s287 + $0x30] sm:$0xff]
    %v295 = vld [vmem:[%s287 + $0x38] sm:$0xff]
    %s296 = scalar_lea.vmem %s3, 5
    %v297 = vld [vmem:[%s296] sm:$0x1]
    %v299 = vperm.slane %v297, 0
    %v302 = vsel %vm122, %v285, 0
    %v305 = vsel %vm122, %v286, 0
    %307 = vmatpush.msra.mxu0 0.0
    %308 = vmatpush.msra.mxu0 0.0
    %309 = vmatpush.msra.mxu0 0.0
    %310 = vmatpush.msra.mxu0 0.0
    %311 = vmatpush.msra.mxu0 0.0
    %312 = vmatpush.msra.mxu0 0.0
    %313 = vmatpush.msra.mxu0 0.0
    %314 = vmatpush.msra.mxu0 0.0
    %315 = vmatpush.msra.mxu0 %v295
    %316 = vmatpush.msra.mxu0 %v294
    %317 = vmatpush.msra.mxu0 %v293
    %318 = vmatpush.msra.mxu0 %v292
    %319 = vmatpush.msra.mxu0 %v291
    %320 = vmatpush.msra.mxu0 %v290
    %321 = vmatpush.msra.mxu0 %v289
    %322 = vmatpush.msra.mxu0 %v288
    %323 = vmatmul.f32.gmra.mxu0 %v302
    %v324 = vpop.f32.mrf.mxu0
    %v325 = vadd.f32 %v299, %v324
    %326 = vmatmul.f32.gmra.mxu0 %v305
    %v327 = vpop.f32.mrf.mxu0
    %v328 = vadd.f32 %v299, %v327
    %329 = vdwg.mxu0
    %330 = vst.msk [vmem:[%s4] sm:$0xff] %vm40, %v325
    %331 = vst.msk [vmem:[%s4 + $0x8] sm:$0xff] %vm40, %v328
    // Predicated region
    $region22: #{forward.1} parent=1 // pred_check
      _
    $region23: #{forward.1} parent=1 // pred_check_branch
      %333 = sbr.rel (0) target = $region25
    $region24: #{forward.1} parent=1 // pred_region
      _
    $region25: #{forward.1} parent=1 // pred_fallthru
      _
    // Predicated region
    $region26: #{forward.1} parent=1 // pred_check
      _
    $region27: #{forward.1} parent=1 // pred_check_branch
      %335 = sbr.rel (0) target = $region29
    $region28: #{forward.1} parent=1 // pred_region
      _
    $region29: #{forward.1} parent=1 // pred_fallthru
      _
    %336 = vsyncpa [#allocation3], 1

</llo_original>
